<compile_context>
chip_gen: v6e
topology: v6e:2x2x1
jax: 0.10.0
libtpu: 0.0.40
codegen_flags: <defaults>
</compile_context>

<pallas_src>
import functools

import jax
import jax.numpy as jnp
from jax.experimental import pallas as pl
from jax.experimental.pallas import tpu as pltpu

LANE = 128


def _round_up(v, m=LANE):
    return ((v + m - 1) // m) * m


# -----------------------------------------------------------------------------
# Pallas kernel: one graph per grid step. Feature dims padded to 128 lanes so
# the 4 matmuls and the output store are lane-dense. bf16 MXU inputs, f32 acc.
# -----------------------------------------------------------------------------
def gcn_fused_kernel(x_ref, a_ref, w1_ref, b1_ref, w2_ref, b2_ref, out_ref, *,
                     num_classes):
    x = x_ref[0]    # (N, F_in)  bf16
    a = a_ref[0]    # (N, N)     bf16 normalized adjacency (reused by both layers)

    # --- layer 1: GCNConv(F_in -> Hp) ---
    xw = jnp.dot(x, w1_ref[...], preferred_element_type=jnp.float32)        # (N, Hp) f32
    h1 = jnp.dot(a, xw.astype(jnp.bfloat16),
                 preferred_element_type=jnp.float32) + b1_ref[...]           # (N, Hp) f32
    h1 = jnp.maximum(h1, 0.0)                                                # ReLU
    # F.dropout(h, training=self.training): identity in eval mode.
    # TODO(synk): training-mode dropout (Bernoulli mask via pltpu.prng_*) not emitted.

    # --- layer 2: GCNConv(Hp -> Cp) ---
    hw = jnp.dot(h1.astype(jnp.bfloat16), w2_ref[...],
                 preferred_element_type=jnp.float32)                         # (N, Cp) f32
    h2 = jnp.dot(a, hw.astype(jnp.bfloat16),
                 preferred_element_type=jnp.float32) + b2_ref[...]           # (N, Cp) f32

    # --- log_softmax over classes; padded columns masked to -inf first ---
    col = jax.lax.broadcasted_iota(jnp.int32, h2.shape, dimension=1)
    h2 = jnp.where(col < num_classes, h2, jnp.float32(-1e30))
    m = jnp.max(h2, axis=1, keepdims=True)
    z = h2 - m
    lse = jnp.log(jnp.sum(jnp.exp(z), axis=1, keepdims=True))
    out_ref[0] = z - lse                                                     # lane-dense (N, 128) store


@jax.jit
def gcn_forward(x, a_hat, w1, b1, w2, b2):
    """x: (G, N, F_in) f32, a_hat: (G, N, N) f32, params at PyG shapes."""
    g, n, f_in = x.shape
    h = w1.shape[1]
    c = w2.shape[1]
    hp, cp = _round_up(h), _round_up(c)

    # bf16 MXU operands (f32 accumulation inside the kernel); zero-pad feature
    # dims to 128 lanes (zero pads are exact for the matmuls / bias / ReLU).
    x_bf = x.astype(jnp.bfloat16)
    a_bf = a_hat.astype(jnp.bfloat16)
    w1_p = jnp.pad(w1, ((0, 0), (0, hp - h))).astype(jnp.bfloat16)
    b1_p = jnp.pad(b1, ((0, 0), (0, hp - h)))
    w2_p = jnp.pad(w2, ((0, hp - h), (0, cp - c))).astype(jnp.bfloat16)
    b2_p = jnp.pad(b2, ((0, 0), (0, cp - c)))

    kernel = functools.partial(gcn_fused_kernel, num_classes=c)
    out_padded = pl.pallas_call(
        kernel,
        out_shape=jax.ShapeDtypeStruct((g, n, cp), jnp.float32),
        grid=(g,),
        in_specs=[
            pl.BlockSpec((1, n, f_in), lambda i: (i, 0, 0)),   # x, per graph
            pl.BlockSpec((1, n, n), lambda i: (i, 0, 0)),      # A_hat, per graph
            pl.BlockSpec((f_in, hp), lambda i: (0, 0)),        # W1 (shared)
            pl.BlockSpec((1, hp), lambda i: (0, 0)),           # b1 (shared)
            pl.BlockSpec((hp, cp), lambda i: (0, 0)),          # W2 (shared)
            pl.BlockSpec((1, cp), lambda i: (0, 0)),           # b2 (shared)
        ],
        out_specs=pl.BlockSpec((1, n, cp), lambda i: (i, 0, 0)),
        compiler_params=pltpu.CompilerParams(
            dimension_semantics=("parallel",),
            vmem_limit_bytes=32 * 1024 * 1024,
        ),
    )(x_bf, a_bf, w1_p, b1_p, w2_p, b2_p)
    # TODO(synk): at real (Cora-scale, sparse) sizes, replace the dense
    # per-graph A_hat block with a row-tiled grid + block-sparse adjacency via
    # pltpu.PrefetchScalarGridSpec so only nonzero A tiles are DMA'd/multiplied.
    return out_padded[:, :, :c]


# -----------------------------------------------------------------------------
# Glue (plain JAX): dense normalized adjacency matching PyG's gcn_norm:
# scatter-ADD of unit edge weights (duplicates accumulate), self-loops added
# only for nodes without one, then D^-1/2 (A + I') D^-1/2.
# -----------------------------------------------------------------------------
def build_normalized_adjacency(edge_index, num_nodes):
    src, dst = edge_index[0], edge_index[1]
    adj = jnp.zeros((num_nodes, num_nodes), dtype=jnp.float32)
    adj = adj.at[dst, src].add(1.0)                        # message j -> i at row i
    diag = jnp.diagonal(adj)
    adj = adj + jnp.diag(jnp.where(diag > 0, 0.0, 1.0))    # add_remaining_self_loops
    deg = jnp.sum(adj, axis=1)
    dinv_sqrt = jnp.where(deg > 0, jax.lax.rsqrt(deg), 0.0)
    return dinv_sqrt[:, None] * adj * dinv_sqrt[None, :]


def glorot(key, shape):
    fan_in, fan_out = shape
    limit = jnp.sqrt(6.0 / (fan_in + fan_out))
    return jax.random.uniform(key, shape, jnp.float32, -limit, limit)


if __name__ == "__main__":
    # Small synthetic "Cora-like" problem, batched over G graphs.
    G = 4            # graphs per pallas_call (amortizes per-call overhead)
    N = 64           # nodes per graph
    F_IN = 32        # dataset.num_node_features (small stand-in)
    HIDDEN = 16      # GCNConv(F_IN, 16)
    C = 8            # dataset.num_classes (small stand-in)
    E = 256          # directed edges per graph

    key = jax.random.PRNGKey(0)
    k_x, k_e, k_w1, k_w2 = jax.random.split(key, 4)

    x = jax.random.normal(k_x, (G, N, F_IN), dtype=jnp.float32)
    edge_keys = jax.random.split(k_e, G)
    edge_index = jnp.stack(
        [jax.random.randint(k, (2, E), 0, N, dtype=jnp.int32) for k in edge_keys])

    # Deterministic parameters (Glorot weights, zero bias), GCNConv shapes.
    w1 = glorot(k_w1, (F_IN, HIDDEN))
    b1 = jnp.zeros((1, HIDDEN), jnp.float32)
    w2 = glorot(k_w2, (HIDDEN, C))
    b2 = jnp.zeros((1, C), jnp.float32)

    a_hat = jnp.stack(
        [build_normalized_adjacency(edge_index[i], N) for i in range(G)])

    out = gcn_forward(x, a_hat, w1, b1, w2, b2)
    jax.block_until_ready(out)

    assert out.shape == (G, N, C)
    # Sanity: rows of log_softmax exponentiate-sum to 1.
    row_sums = jnp.sum(jnp.exp(out), axis=-1)
    assert bool(jnp.allclose(row_sums, 1.0, atol=1e-4))
    # Pure-JAX f32 reference (kernel uses bf16 MXU inputs -> loose tolerance).
    ref = jax.nn.log_softmax(
        a_hat @ (jnp.maximum(a_hat @ (x @ w1) + b1, 0.0) @ w2) + b2, axis=-1)
    assert bool(jnp.allclose(out, ref, atol=2.5e-1)), float(jnp.max(jnp.abs(out - ref)))

    print("KERNEL_OK")
</pallas_src>

<mosaic_0001>
module attributes {stable_mosaic.version = 11 : i64} {
  func.func @gcn_fused_kernel(%arg0: i32, %arg1: memref<1x64x32xbf16, #tpu.memory_space<vmem>>, %arg2: memref<1x64x64xbf16, #tpu.memory_space<vmem>>, %arg3: memref<32x128xbf16, #tpu.memory_space<vmem>>, %arg4: memref<1x128xf32, #tpu.memory_space<vmem>>, %arg5: memref<128x128xbf16, #tpu.memory_space<vmem>>, %arg6: memref<1x128xf32, #tpu.memory_space<vmem>>, %arg7: memref<1x64x128xf32, #tpu.memory_space<vmem>>) attributes {dimension_semantics = [#tpu.dimension_semantics<parallel>], iteration_bounds = array<i64: 4>, scalar_prefetch = 0 : i64, scratch_operands = 0 : i64, tpu.core_type = #tpu.core_type<tc>, window_params = [{transform_indices = @transform_0, window_bounds = array<i64: 1, 64, 32>}, {transform_indices = @transform_1, window_bounds = array<i64: 1, 64, 64>}, {pipeline_mode = #tpu.pipeline_mode<synchronous>, transform_indices = @transform_2, window_bounds = array<i64: 32, 128>}, {pipeline_mode = #tpu.pipeline_mode<synchronous>, transform_indices = @transform_3, window_bounds = array<i64: 1, 128>}, {pipeline_mode = #tpu.pipeline_mode<synchronous>, transform_indices = @transform_4, window_bounds = array<i64: 128, 128>}, {pipeline_mode = #tpu.pipeline_mode<synchronous>, transform_indices = @transform_5, window_bounds = array<i64: 1, 128>}, {transform_indices = @transform_6, window_bounds = array<i64: 1, 64, 128>}]} {
    %c0 = arith.constant 0 : index
    %c0_0 = arith.constant 0 : index
    %c0_1 = arith.constant 0 : index
    %0 = vector.load %arg1[%c0, %c0_0, %c0_1] : memref<1x64x32xbf16, #tpu.memory_space<vmem>>, vector<1x64x32xbf16>
    %1 = vector.shape_cast %0 : vector<1x64x32xbf16> to vector<64x32xbf16>
    %c0_2 = arith.constant 0 : index
    %c0_3 = arith.constant 0 : index
    %c0_4 = arith.constant 0 : index
    %2 = vector.load %arg2[%c0_2, %c0_3, %c0_4] : memref<1x64x64xbf16, #tpu.memory_space<vmem>>, vector<1x64x64xbf16>
    %3 = vector.shape_cast %2 : vector<1x64x64xbf16> to vector<64x64xbf16>
    %c0_5 = arith.constant 0 : index
    %c0_6 = arith.constant 0 : index
    %4 = vector.load %arg3[%c0_5, %c0_6] : memref<32x128xbf16, #tpu.memory_space<vmem>>, vector<32x128xbf16>
    %cst = arith.constant dense<0.000000e+00> : vector<64x128xf32>
    %5 = tpu.matmul %1, %4, %cst {dimension_numbers = #tpu.dot_dimension_numbers<[1], [0], [0], [1], [0, 0, 1, 1], [], []>} : vector<64x32xbf16>, vector<32x128xbf16>, vector<64x128xf32> -> vector<64x128xf32>
    %6 = arith.truncf %5 : vector<64x128xf32> to vector<64x128xbf16>
    %cst_7 = arith.constant dense<0.000000e+00> : vector<64x128xf32>
    %7 = tpu.matmul %3, %6, %cst_7 {dimension_numbers = #tpu.dot_dimension_numbers<[1], [0], [0], [1], [0, 0, 1, 1], [], []>} : vector<64x64xbf16>, vector<64x128xbf16>, vector<64x128xf32> -> vector<64x128xf32>
    %c0_8 = arith.constant 0 : index
    %c0_9 = arith.constant 0 : index
    %8 = vector.load %arg4[%c0_8, %c0_9] : memref<1x128xf32, #tpu.memory_space<vmem>>, vector<1x128xf32>
    %9 = vector.broadcast %8 : vector<1x128xf32> to vector<64x128xf32>
    %10 = arith.addf %7, %9 : vector<64x128xf32>
    %cst_10 = arith.constant 0.000000e+00 : f32
    %11 = vector.broadcast %cst_10 : f32 to vector<64x128xf32>
    %12 = arith.maximumf %10, %11 : vector<64x128xf32>
    %13 = arith.truncf %12 : vector<64x128xf32> to vector<64x128xbf16>
    %c0_11 = arith.constant 0 : index
    %c0_12 = arith.constant 0 : index
    %14 = vector.load %arg5[%c0_11, %c0_12] : memref<128x128xbf16, #tpu.memory_space<vmem>>, vector<128x128xbf16>
    %cst_13 = arith.constant dense<0.000000e+00> : vector<64x128xf32>
    %15 = tpu.matmul %13, %14, %cst_13 {dimension_numbers = #tpu.dot_dimension_numbers<[1], [0], [0], [1], [0, 0, 1, 1], [], []>} : vector<64x128xbf16>, vector<128x128xbf16>, vector<64x128xf32> -> vector<64x128xf32>
    %16 = arith.truncf %15 : vector<64x128xf32> to vector<64x128xbf16>
    %cst_14 = arith.constant dense<0.000000e+00> : vector<64x128xf32>
    %17 = tpu.matmul %3, %16, %cst_14 {dimension_numbers = #tpu.dot_dimension_numbers<[1], [0], [0], [1], [0, 0, 1, 1], [], []>} : vector<64x64xbf16>, vector<64x128xbf16>, vector<64x128xf32> -> vector<64x128xf32>
    %c0_15 = arith.constant 0 : index
    %c0_16 = arith.constant 0 : index
    %18 = vector.load %arg6[%c0_15, %c0_16] : memref<1x128xf32, #tpu.memory_space<vmem>>, vector<1x128xf32>
    %19 = vector.broadcast %18 : vector<1x128xf32> to vector<64x128xf32>
    %20 = arith.addf %17, %19 : vector<64x128xf32>
    %21 = tpu.iota {dimensions = array<i32: 1>} : vector<64x128xi32>
    %c8_i32 = arith.constant 8 : i32
    %22 = vector.broadcast %c8_i32 : i32 to vector<64x128xi32>
    %23 = arith.cmpi slt, %21, %22 : vector<64x128xi32>
    %cst_17 = arith.constant -1.000000e+30 : f32
    %24 = vector.broadcast %cst_17 : f32 to vector<64x128xf32>
    %25 = arith.select %23, %20, %24 : vector<64x128xi1>, vector<64x128xf32>
    %cst_18 = arith.constant dense<0xFF800000> : vector<64xf32>
    %26 = vector.multi_reduction <maximumf>, %25, %cst_18 [1] : vector<64x128xf32> to vector<64xf32>
    %27 = vector.shape_cast %26 : vector<64xf32> to vector<64x1xf32>
    %28 = vector.broadcast %27 : vector<64x1xf32> to vector<64x128xf32>
    %29 = arith.subf %25, %28 : vector<64x128xf32>
    %30 = math.exp %29 : vector<64x128xf32>
    %cst_19 = arith.constant dense<0.000000e+00> : vector<64xf32>
    %31 = vector.multi_reduction <add>, %30, %cst_19 [1] : vector<64x128xf32> to vector<64xf32>
    %32 = vector.shape_cast %31 : vector<64xf32> to vector<64x1xf32>
    %33 = math.log %32 : vector<64x1xf32>
    %34 = vector.broadcast %33 : vector<64x1xf32> to vector<64x128xf32>
    %35 = arith.subf %29, %34 : vector<64x128xf32>
    %c0_20 = arith.constant 0 : index
    %c0_21 = arith.constant 0 : index
    %c0_22 = arith.constant 0 : index
    %36 = vector.load %arg7[%c0_20, %c0_21, %c0_22] : memref<1x64x128xf32, #tpu.memory_space<vmem>>, vector<1x64x128xf32>
    %37 = vector.shape_cast %36 : vector<1x64x128xf32> to vector<64x128xf32>
    %38 = vector.shape_cast %35 : vector<64x128xf32> to vector<1x64x128xf32>
    tpu.vector_store %arg7[%c0_20, %c0_21, %c0_22], %38 {strides = array<i32>} : memref<1x64x128xf32, #tpu.memory_space<vmem>>, vector<1x64x128xf32>,
    return
  }
  func.func @transform_0(%arg0: i32) -> (i32, i32, i32) {
    %c0_i32 = arith.constant 0 : i32
    %c0_i32_0 = arith.constant 0 : i32
    %c0_i32_1 = arith.constant 0 : i32
    return %arg0, %c0_i32, %c0_i32_0 : i32, i32, i32
  }
  func.func @transform_1(%arg0: i32) -> (i32, i32, i32) {
    %c0_i32 = arith.constant 0 : i32
    %c0_i32_0 = arith.constant 0 : i32
    %c0_i32_1 = arith.constant 0 : i32
    return %arg0, %c0_i32, %c0_i32_0 : i32, i32, i32
  }
  func.func @transform_2(%arg0: i32) -> (i32, i32) {
    %c0_i32 = arith.constant 0 : i32
    %c0_i32_0 = arith.constant 0 : i32
    %c0_i32_1 = arith.constant 0 : i32
    return %c0_i32, %c0_i32_0 : i32, i32
  }
  func.func @transform_3(%arg0: i32) -> (i32, i32) {
    %c0_i32 = arith.constant 0 : i32
    %c0_i32_0 = arith.constant 0 : i32
    %c0_i32_1 = arith.constant 0 : i32
    return %c0_i32, %c0_i32_0 : i32, i32
  }
  func.func @transform_4(%arg0: i32) -> (i32, i32) {
    %c0_i32 = arith.constant 0 : i32
    %c0_i32_0 = arith.constant 0 : i32
    %c0_i32_1 = arith.constant 0 : i32
    return %c0_i32, %c0_i32_0 : i32, i32
  }
  func.func @transform_5(%arg0: i32) -> (i32, i32) {
    %c0_i32 = arith.constant 0 : i32
    %c0_i32_0 = arith.constant 0 : i32
    %c0_i32_1 = arith.constant 0 : i32
    return %c0_i32, %c0_i32_0 : i32, i32
  }
  func.func @transform_6(%arg0: i32) -> (i32, i32, i32) {
    %c0_i32 = arith.constant 0 : i32
    %c0_i32_0 = arith.constant 0 : i32
    %c0_i32_1 = arith.constant 0 : i32
    return %arg0, %c0_i32, %c0_i32_0 : i32, i32, i32
  }
}

</mosaic_0001>

<llo_original>
// kernel: gcn_forward.1
$region0: #{gcn_forward.1}
  #allocation0 [shape = 'u32[]', space=smem, size = 0x4, offset = 0x4, fixed_abs, tag = 'smem constant byte address 0x4 - core index']
  #allocation1 [shape = 'u32[144,128]{1,0:T(1,128)}', space=vmem, size = 0x12000, scoped, tag = 'internal scratch']
  %s0 = inlined_call_operand.vmem [shape: bf16[4,64,32], index: 0, kind: input, shape index: {}]
  %s1 = inlined_call_operand.vmem [shape: bf16[4,64,64], index: 1, kind: input, shape index: {}]
  %s2 = inlined_call_operand.vmem [shape: bf16[32,128], index: 2, kind: input, shape index: {}]
  %s3 = inlined_call_operand.vmem [shape: f32[1,128], index: 3, kind: input, shape index: {}]
  %s4 = inlined_call_operand.vmem [shape: bf16[128,128], index: 4, kind: input, shape index: {}]
  %s5 = inlined_call_operand.vmem [shape: f32[1,128], index: 5, kind: input, shape index: {}]
  %s6 = inlined_call_operand.vmem [shape: f32[4,64,128], index: 6, kind: output, shape index: {}]
  %s7 = sld [smem:[#allocation0]]
  $region57: #{gcn_forward.1} parent=0
    _
  %s9 = ssub.s32 1, %s7
  %s10 = scalar_select 0, %s9, %s7
  loop: start=0, step=1, limit=6
  $region2: #{gcn_forward.1} parent=0 // loop_pre_header
    _
  $region3: #{gcn_forward.1} parent=0 // loop_header
    %s12 = sphi 0, %s16
    %p13 = scmp.ge.s32.totalorder %s12, 6
    %s22 = sphi 0, %s24
    %s25 = sphi 0, %s22
    %s26 = sphi 0, %s25
    %s42 = sphi 0, %s26
    %s48 = sphi 0, %s50
    %s51 = sphi 0, %s48
    %s52 = sphi 0, %s51
    %s68 = sphi 0, %s52
    %s72 = sphi 0, %s72
    %s74 = sphi 0, %s72
    %s75 = sphi 0, %s74
    %s89 = sphi 0, %s75
    %s93 = sphi 0, %s93
    %s95 = sphi 0, %s93
    %s96 = sphi 0, %s95
    %s110 = sphi 0, %s96
    %s114 = sphi 0, %s114
    %s116 = sphi 0, %s114
    %s117 = sphi 0, %s116
    %s131 = sphi 0, %s117
    %s135 = sphi 0, %s135
    %s137 = sphi 0, %s135
    %s138 = sphi 0, %s137
    %s152 = sphi 0, %s138
    %s158 = sphi 0, %s160
    %s161 = sphi 0, %s158
    %s162 = sphi 0, %s161
    %s178 = sphi 0, %s162
  $region4: #{gcn_forward.1} parent=0 // loop_header_branch
    %15 = sbr.rel (%p13) target = $region8
  $region5: #{gcn_forward.1} parent=0 // loop_body
    %s17 = ssub.s32 %s12, 1
    %s18 = ssub.s32 %s12, 2
    %s19 = sadd.s32 %s12, 1
    %s20 = ssub.s32 %s12, %s19
    %p21 = scmp.eq.s32.totalorder %s20, 0
    %s23 = sadd.s32 %s22, 1
    %s24 = scalar_select %p21, %s22, %s23
    %p27 = pneg %p21
    %p28 = scmp.eq.s32.totalorder %s12, 3
    %p29 = por %p27, %p28
    %p30 = scmp.ne.s32.totalorder %s22, %s25
    %p31 = scmp.eq.s32.totalorder %s12, 0
    %p32 = por %p30, %p31
    %p33 = scmp.ne.s32.totalorder %s22, %s25
    %p34 = scmp.eq.s32.totalorder %s17, 3
    %p35 = por %p33, %p34
    %p36 = scmp.ne.s32.totalorder %s25, %s26
    %p37 = scmp.eq.s32.totalorder %s17, 0
    %p38 = por %p36, %p37
    %p39 = scmp.ne.s32.totalorder %s25, %s26
    %p40 = scmp.eq.s32.totalorder %s18, 3
    %p41 = por %p39, %p40
    %p43 = scmp.ne.s32.totalorder %s26, %s42
    %p44 = scmp.eq.s32.totalorder %s18, 0
    %p45 = por %p43, %p44
    %s46 = ssub.s32 %s12, %s19
    %p47 = scmp.eq.s32.totalorder %s46, 0
    %s49 = sadd.s32 %s48, 1
    %s50 = scalar_select %p47, %s48, %s49
    %p53 = pneg %p47
    %p54 = scmp.eq.s32.totalorder %s12, 3
    %p55 = por %p53, %p54
    %p56 = scmp.ne.s32.totalorder %s48, %s51
    %p57 = scmp.eq.s32.totalorder %s12, 0
    %p58 = por %p56, %p57
    %p59 = scmp.ne.s32.totalorder %s48, %s51
    %p60 = scmp.eq.s32.totalorder %s17, 3
    %p61 = por %p59, %p60
    %p62 = scmp.ne.s32.totalorder %s51, %s52
    %p63 = scmp.eq.s32.totalorder %s17, 0
    %p64 = por %p62, %p63
    %p65 = scmp.ne.s32.totalorder %s51, %s52
    %p66 = scmp.eq.s32.totalorder %s18, 3
    %p67 = por %p65, %p66
    %p69 = scmp.ne.s32.totalorder %s52, %s68
    %p70 = scmp.eq.s32.totalorder %s18, 0
    %p71 = por %p69, %p70
    %s73 = sadd.s32 %s72, 1
    %p76 = scmp.eq.s32.totalorder %s12, 3
    %p77 = scmp.ne.s32.totalorder %s72, %s74
    %p78 = scmp.eq.s32.totalorder %s12, 0
    %p79 = por %p77, %p78
    %p80 = scmp.ne.s32.totalorder %s72, %s74
    %p81 = scmp.eq.s32.totalorder %s17, 3
    %p82 = por %p80, %p81
    %p83 = scmp.ne.s32.totalorder %s74, %s75
    %p84 = scmp.eq.s32.totalorder %s17, 0
    %p85 = por %p83, %p84
    %p86 = scmp.ne.s32.totalorder %s74, %s75
    %p87 = scmp.eq.s32.totalorder %s18, 3
    %p88 = por %p86, %p87
    %p90 = scmp.ne.s32.totalorder %s75, %s89
    %p91 = scmp.eq.s32.totalorder %s18, 0
    %p92 = por %p90, %p91
    %s94 = sadd.s32 %s93, 1
    %p97 = scmp.eq.s32.totalorder %s12, 3
    %p98 = scmp.ne.s32.totalorder %s93, %s95
    %p99 = scmp.eq.s32.totalorder %s12, 0
    %p100 = por %p98, %p99
    %p101 = scmp.ne.s32.totalorder %s93, %s95
    %p102 = scmp.eq.s32.totalorder %s17, 3
    %p103 = por %p101, %p102
    %p104 = scmp.ne.s32.totalorder %s95, %s96
    %p105 = scmp.eq.s32.totalorder %s17, 0
    %p106 = por %p104, %p105
    %p107 = scmp.ne.s32.totalorder %s95, %s96
    %p108 = scmp.eq.s32.totalorder %s18, 3
    %p109 = por %p107, %p108
    %p111 = scmp.ne.s32.totalorder %s96, %s110
    %p112 = scmp.eq.s32.totalorder %s18, 0
    %p113 = por %p111, %p112
    %s115 = sadd.s32 %s114, 1
    %p118 = scmp.eq.s32.totalorder %s12, 3
    %p119 = scmp.ne.s32.totalorder %s114, %s116
    %p120 = scmp.eq.s32.totalorder %s12, 0
    %p121 = por %p119, %p120
    %p122 = scmp.ne.s32.totalorder %s114, %s116
    %p123 = scmp.eq.s32.totalorder %s17, 3
    %p124 = por %p122, %p123
    %p125 = scmp.ne.s32.totalorder %s116, %s117
    %p126 = scmp.eq.s32.totalorder %s17, 0
    %p127 = por %p125, %p126
    %p128 = scmp.ne.s32.totalorder %s116, %s117
    %p129 = scmp.eq.s32.totalorder %s18, 3
    %p130 = por %p128, %p129
    %p132 = scmp.ne.s32.totalorder %s117, %s131
    %p133 = scmp.eq.s32.totalorder %s18, 0
    %p134 = por %p132, %p133
    %s136 = sadd.s32 %s135, 1
    %p139 = scmp.eq.s32.totalorder %s12, 3
    %p140 = scmp.ne.s32.totalorder %s135, %s137
    %p141 = scmp.eq.s32.totalorder %s12, 0
    %p142 = por %p140, %p141
    %p143 = scmp.ne.s32.totalorder %s135, %s137
    %p144 = scmp.eq.s32.totalorder %s17, 3
    %p145 = por %p143, %p144
    %p146 = scmp.ne.s32.totalorder %s137, %s138
    %p147 = scmp.eq.s32.totalorder %s17, 0
    %p148 = por %p146, %p147
    %p149 = scmp.ne.s32.totalorder %s137, %s138
    %p150 = scmp.eq.s32.totalorder %s18, 3
    %p151 = por %p149, %p150
    %p153 = scmp.ne.s32.totalorder %s138, %s152
    %p154 = scmp.eq.s32.totalorder %s18, 0
    %p155 = por %p153, %p154
    %s156 = ssub.s32 %s12, %s19
    %p157 = scmp.eq.s32.totalorder %s156, 0
    %s159 = sadd.s32 %s158, 1
    %s160 = scalar_select %p157, %s158, %s159
    %p163 = pneg %p157
    %p164 = scmp.eq.s32.totalorder %s12, 3
    %p165 = por %p163, %p164
    %p166 = scmp.ne.s32.totalorder %s158, %s161
    %p167 = scmp.eq.s32.totalorder %s12, 0
    %p168 = por %p166, %p167
    %p169 = scmp.ne.s32.totalorder %s158, %s161
    %p170 = scmp.eq.s32.totalorder %s17, 3
    %p171 = por %p169, %p170
    %p172 = scmp.ne.s32.totalorder %s161, %s162
    %p173 = scmp.eq.s32.totalorder %s17, 0
    %p174 = por %p172, %p173
    %p175 = scmp.ne.s32.totalorder %s161, %s162
    %p176 = scmp.eq.s32.totalorder %s18, 3
    %p177 = por %p175, %p176
    %p179 = scmp.ne.s32.totalorder %s162, %s178
    %p180 = scmp.eq.s32.totalorder %s18, 0
    %p181 = por %p179, %p180
    %p182 = scmp.le.s32.totalorder 1, %s12
    %p183 = scmp.lt.s32.totalorder %s12, 5
    %p184 = pnand %p182, %p183
    %p185 = pneg %p184
    // Predicated region
    $region9: #{gcn_forward.1} parent=5 // pred_check
      _
    $region10: #{gcn_forward.1} parent=5 // pred_check_branch
      %187 = sbr.rel (%p184) target = $region12
    $region11: #{gcn_forward.1} parent=5 // pred_region
      %s188 = ssub.s32 %s12, 1
      // Predicated region
      $region13: #{gcn_forward.1} parent=11 // pred_check
        %p189 = pneg %p85
      $region14: #{gcn_forward.1} parent=11 // pred_check_branch
        %191 = sbr.rel (%p189) target = $region16
      $region15: #{gcn_forward.1} parent=11 // pred_region
        _
      $region16: #{gcn_forward.1} parent=11 // pred_fallthru
        _
      // Predicated region
      $region17: #{gcn_forward.1} parent=11 // pred_check
        %p192 = pneg %p106
      $region18: #{gcn_forward.1} parent=11 // pred_check_branch
        %194 = sbr.rel (%p192) target = $region20
      $region19: #{gcn_forward.1} parent=11 // pred_region
        _
      $region20: #{gcn_forward.1} parent=11 // pred_fallthru
        _
      // Predicated region
      $region21: #{gcn_forward.1} parent=11 // pred_check
        %p195 = pneg %p127
      $region22: #{gcn_forward.1} parent=11 // pred_check_branch
        %197 = sbr.rel (%p195) target = $region24
      $region23: #{gcn_forward.1} parent=11 // pred_region
        _
      $region24: #{gcn_forward.1} parent=11 // pred_fallthru
        _
      // Predicated region
      $region25: #{gcn_forward.1} parent=11 // pred_check
        %p198 = pneg %p148
      $region26: #{gcn_forward.1} parent=11 // pred_check_branch
        %200 = sbr.rel (%p198) target = $region28
      $region27: #{gcn_forward.1} parent=11 // pred_region
        _
      $region28: #{gcn_forward.1} parent=11 // pred_fallthru
        _
    $region12: #{gcn_forward.1} parent=5 // pred_fallthru
      _
    %p201 = scmp.lt.s32.totalorder %s12, 4
    // Predicated region
    $region29: #{gcn_forward.1} parent=5 // pred_check
      %p202 = pneg %p201
    $region30: #{gcn_forward.1} parent=5 // pred_check_branch
      %204 = sbr.rel (%p202) target = $region32
    $region31: #{gcn_forward.1} parent=5 // pred_region
      // Predicated region
      $region33: #{gcn_forward.1} parent=31 // pred_check
        %p205 = pneg %p32
      $region34: #{gcn_forward.1} parent=31 // pred_check_branch
        %207 = sbr.rel (%p205) target = $region36
      $region35: #{gcn_forward.1} parent=31 // pred_region
        %p208 = scmp.lt.s32.totalorder %s12, 3
        %s209 = scalar_select %p208, %s12, 3
        %s210 = smul.addr %s209, 8
        %s211 = smul.addr %s210, 4
        %s212 = scalar_lea.vmem %s0, %s211
      $region36: #{gcn_forward.1} parent=31 // pred_fallthru
        _
      // Predicated region
      $region37: #{gcn_forward.1} parent=31 // pred_check
        %p213 = pneg %p58
      $region38: #{gcn_forward.1} parent=31 // pred_check_branch
        %215 = sbr.rel (%p213) target = $region40
      $region39: #{gcn_forward.1} parent=31 // pred_region
        %p216 = scmp.lt.s32.totalorder %s12, 3
        %s217 = scalar_select %p216, %s12, 3
        %s218 = smul.addr %s217, 8
        %s219 = smul.addr %s218, 4
        %s220 = scalar_lea.vmem %s1, %s219
      $region40: #{gcn_forward.1} parent=31 // pred_fallthru
        _
    $region32: #{gcn_forward.1} parent=5 // pred_fallthru
      _
    %p221 = scmp.le.s32.totalorder 1, %s12
    %p222 = scmp.lt.s32.totalorder %s12, 5
    %p223 = pnand %p221, %p222
    %p224 = pneg %p223
    // Predicated region
    $region41: #{gcn_forward.1} parent=5 // pred_check
      _
    $region42: #{gcn_forward.1} parent=5 // pred_check_branch
      %226 = sbr.rel (%p223) target = $region44
    $region43: #{gcn_forward.1} parent=5 // pred_region
      %s227 = ssub.s32 %s12, 1
      %p228 = scmp.lt.s32.totalorder %s17, 3
      %s229 = scalar_select %p228, %s17, 3
      %s230 = smul.addr %s229, 8
      %s231 = smul.addr %s230, 4
      %s232 = scalar_lea.vmem %s0, %s231
      %p233 = pneg %p38
      %p234 = pneg %p35
      %p235 = scmp.lt.s32.totalorder %s17, 3
      %s236 = scalar_select %p235, %s17, 3
      %s237 = smul.addr %s236, 8
      %s238 = smul.addr %s237, 4
      %s239 = scalar_lea.vmem %s1, %s238
      %p240 = pneg %p64
      %p241 = pneg %p61
      %p242 = pneg %p85
      %p243 = pneg %p82
      %p244 = pneg %p106
      %p245 = pneg %p103
      %p246 = pneg %p127
      %p247 = pneg %p124
      %p248 = pneg %p148
      %p249 = pneg %p145
      %p250 = pneg %p174
      %p251 = pneg %p171
      %p252 = scmp.lt.s32.totalorder %s17, 3
      %s253 = scalar_select %p252, %s17, 3
      %s254 = smul.addr %s253, 8
      %s255 = smul.addr %s254, 8
      %s256 = scalar_lea.vmem %s6, %s255
      %p257 = scmp.lt.s32.totalorder %s17, 3
      %s258 = scalar_select %p257, %s17, 3
      %s259 = smul.addr %s258, 8
      %s260 = smul.addr %s259, 4
      %s261 = scalar_lea.vmem %s0, %s260
      %p262 = scmp.lt.s32.totalorder %s17, 3
      %s263 = scalar_select %p262, %s17, 3
      %s264 = smul.addr %s263, 8
      %s265 = smul.addr %s264, 4
      %s266 = scalar_lea.vmem %s1, %s265
      %p267 = scmp.lt.s32.totalorder %s17, 3
      %s268 = scalar_select %p267, %s17, 3
      %s269 = smul.addr %s268, 8
      %s270 = smul.addr %s269, 8
      %s271 = scalar_lea.vmem %s6, %s270
      %v273 = vld [vmem:[%s261] sm:$0xf]
      %v274 = vld [vmem:[%s261 + $0x4] sm:$0xf]
      %v275 = vld [vmem:[%s261 + $0x8] sm:$0xf]
      %v276 = vld [vmem:[%s261 + $0xc] sm:$0xf]
      %v277 = vld [vmem:[%s261 + $0x10] sm:$0xf]
      %v278 = vld [vmem:[%s261 + $0x14] sm:$0xf]
      %v279 = vld [vmem:[%s261 + $0x18] sm:$0xf]
      %v280 = vld [vmem:[%s261 + $0x1c] sm:$0xf]
      %v281 = vld [vmem:[%s266] sm:$0xf]
      %v282 = vld [vmem:[%s266 + $0x4] sm:$0xf]
      %v283 = vld [vmem:[%s266 + $0x8] sm:$0xf]
      %v284 = vld [vmem:[%s266 + $0xc] sm:$0xf]
      %v285 = vld [vmem:[%s266 + $0x10] sm:$0xf]
      %v286 = vld [vmem:[%s266 + $0x14] sm:$0xf]
      %v287 = vld [vmem:[%s266 + $0x18] sm:$0xf]
      %v288 = vld [vmem:[%s266 + $0x1c] sm:$0xf]
      %v289 = vld [vmem:[%s2] sm:$0xf]
      %v290 = vld [vmem:[%s2 + $0x4] sm:$0xf]
      %v291 = vld [vmem:[%s2 + $0x8] sm:$0xf]
      %v292 = vld [vmem:[%s2 + $0xc] sm:$0xf]
      %v301 = vunpack.c.l.b16 %v273
      %v302 = vunpack.c.l.b16 %v274
      %v303 = vunpack.c.l.b16 %v275
      %v304 = vunpack.c.l.b16 %v276
      %v305 = vunpack.c.l.b16 %v277
      %v306 = vunpack.c.l.b16 %v278
      %v307 = vunpack.c.l.b16 %v279
      %v308 = vunpack.c.l.b16 %v280
      %v309 = vpack.c.b16 %v302, %v301
      %v310 = vpack.c.b16 %v304, %v303
      %v311 = vpack.c.b16 %v306, %v305
      %v312 = vpack.c.b16 %v308, %v307
      %v317 = vunpack.c.l.b16 %v289
      %v318 = vunpack.c.l.b16 %v290
      %v319 = vunpack.c.l.b16 %v291
      %v320 = vunpack.c.l.b16 %v292
      %v321 = vpack.c.b16 %v318, %v317
      %v322 = vpack.c.b16 %v320, %v319
      %vm325 = vcmask 261120
      %v327 = vsel %vm325, %v309, 0
      %v330 = vsel %vm325, %v310, 0
      %v333 = vsel %vm325, %v311, 0
      %v336 = vsel %vm325, %v312, 0
      %338 = vmatprep.subr.bf16.mxu0 0
      %339 = vmatpush1.bf16.msra.mxu0 0
      %340 = vmatprep.subr.bf16.mxu0 0
      %341 = vmatpush1.bf16.msra.mxu0 0
      %342 = vmatprep.subr.bf16.mxu0 0
      %343 = vmatpush1.bf16.msra.mxu0 0
      %344 = vmatprep.subr.bf16.mxu0 0
      %345 = vmatpush1.bf16.msra.mxu0 0
      %346 = vmatprep.subr.bf16.mxu0 0
      %347 = vmatpush1.bf16.msra.mxu0 0
      %348 = vmatprep.subr.bf16.mxu0 0
      %349 = vmatpush1.bf16.msra.mxu0 0
      %350 = vmatprep.subr.bf16.mxu0 0
      %351 = vmatpush1.bf16.msra.mxu0 %v322
      %352 = vmatprep.subr.bf16.mxu0 0
      %353 = vmatpush1.bf16.msra.mxu0 %v321
      %354 = vmatprep.subr.bf16.mxu0 0
      %355 = vmatpush2.bf16.msra.mxu0 0
      %356 = vmatprep.subr.bf16.mxu0 0
      %357 = vmatpush2.bf16.msra.mxu0 0
      %358 = vmatprep.subr.bf16.mxu0 0
      %359 = vmatpush2.bf16.msra.mxu0 0
      %360 = vmatprep.subr.bf16.mxu0 0
      %361 = vmatpush2.bf16.msra.mxu0 0
      %362 = vmatprep.subr.bf16.mxu0 0
      %363 = vmatpush2.bf16.msra.mxu0 0
      %364 = vmatprep.subr.bf16.mxu0 0
      %365 = vmatpush2.bf16.msra.mxu0 0
      %366 = vmatprep.subr.bf16.mxu0 0
      %367 = vmatpush2.bf16.msra.mxu0 0
      %368 = vmatprep.subr.bf16.mxu0 0
      %369 = vmatpush2.bf16.msra.mxu0 0
      %370 = vmatprep.mubr.bf16.mxu0 0
      %371 = vmatmul.mubr.bf16.gmra.mxu0 %v327
      %v372 = vpop.f32.mrf.mxu0
      %v373 = vadd.f32 0.0, %v372
      %v374 = vpop.f32.mrf.mxu0
      %v375 = vpop.f32.mrf.mxu0
      %v376 = vadd.f32 0.0, %v375
      %v377 = vpop.f32.mrf.mxu0
      %378 = vmatprep.mubr.bf16.mxu0 0
      %379 = vmatmul.mubr.bf16.gmra.mxu0 %v330
      %v380 = vpop.f32.mrf.mxu0
      %v381 = vadd.f32 0.0, %v380
      %v382 = vpop.f32.mrf.mxu0
      %v383 = vpop.f32.mrf.mxu0
      %v384 = vadd.f32 0.0, %v383
      %v385 = vpop.f32.mrf.mxu0
      %386 = vmatprep.mubr.bf16.mxu0 0
      %387 = vmatmul.mubr.bf16.gmra.mxu0 %v333
      %v388 = vpop.f32.mrf.mxu0
      %v389 = vadd.f32 0.0, %v388
      %v390 = vpop.f32.mrf.mxu0
      %v391 = vpop.f32.mrf.mxu0
      %v392 = vadd.f32 0.0, %v391
      %v393 = vpop.f32.mrf.mxu0
      %394 = vmatprep.mubr.bf16.mxu0 0
      %395 = vmatmul.mubr.bf16.gmra.mxu0 %v336
      %v396 = vpop.f32.mrf.mxu0
      %v397 = vadd.f32 0.0, %v396
      %v398 = vpop.f32.mrf.mxu0
      %v399 = vpop.f32.mrf.mxu0
      %v400 = vadd.f32 0.0, %v399
      %v401 = vpop.f32.mrf.mxu0
      %402 = vdwg.mxu0
      %v403 = vpack.c.bf16 %v376, %v373
      %v404 = vpack.c.bf16 %v384, %v381
      %v405 = vpack.c.bf16 %v392, %v389
      %v406 = vpack.c.bf16 %v400, %v397
      %v407 = vld [vmem:[%s3] sm:$0x1]
      %v409 = vlaneseq
      %v410 = vshrl.u32 %v409, 7
      %v411 = vsub.s32 0, %v410
      %v412 = vrot.slane %v407, %v411
      %v422 = vunpack.c.l.b16 %v281
      %v423 = vunpack.c.l.b16 %v282
      %v424 = vunpack.c.l.b16 %v283
      %v425 = vunpack.c.l.b16 %v284
      %v426 = vunpack.c.l.b16 %v285
      %v427 = vunpack.c.l.b16 %v286
      %v428 = vunpack.c.l.b16 %v287
      %v429 = vunpack.c.l.b16 %v288
      %v430 = vpack.c.b16 %v423, %v422
      %v431 = vpack.c.b16 %v425, %v424
      %v432 = vpack.c.b16 %v427, %v426
      %v433 = vpack.c.b16 %v429, %v428
      %vm434 = vcmask 523264
      %v436 = vsel %vm434, %v430, 0
      %v439 = vsel %vm434, %v431, 0
      %v442 = vsel %vm434, %v432, 0
      %v445 = vsel %vm434, %v433, 0
      %447 = vmatprep.subr.bf16.mxu0 0
      %448 = vmatpush1.bf16.msra.mxu0 0
      %449 = vmatprep.subr.bf16.mxu0 0
      %450 = vmatpush1.bf16.msra.mxu0 0
      %451 = vmatprep.subr.bf16.mxu0 0
      %452 = vmatpush1.bf16.msra.mxu0 0
      %453 = vmatprep.subr.bf16.mxu0 0
      %454 = vmatpush1.bf16.msra.mxu0 0
      %455 = vmatprep.subr.bf16.mxu0 0
      %456 = vmatpush1.bf16.msra.mxu0 %v406
      %457 = vmatprep.subr.bf16.mxu0 0
      %458 = vmatpush1.bf16.msra.mxu0 %v405
      %459 = vmatprep.subr.bf16.mxu0 0
      %460 = vmatpush1.bf16.msra.mxu0 %v404
      %461 = vmatprep.subr.bf16.mxu0 0
      %462 = vmatpush1.bf16.msra.mxu0 %v403
      %463 = vmatprep.subr.bf16.mxu0 0
      %464 = vmatpush2.bf16.msra.mxu0 0
      %465 = vmatprep.subr.bf16.mxu0 0
      %466 = vmatpush2.bf16.msra.mxu0 0
      %467 = vmatprep.subr.bf16.mxu0 0
      %468 = vmatpush2.bf16.msra.mxu0 0
      %469 = vmatprep.subr.bf16.mxu0 0
      %470 = vmatpush2.bf16.msra.mxu0 0
      %471 = vmatprep.subr.bf16.mxu0 0
      %472 = vmatpush2.bf16.msra.mxu0 0
      %473 = vmatprep.subr.bf16.mxu0 0
      %474 = vmatpush2.bf16.msra.mxu0 0
      %475 = vmatprep.subr.bf16.mxu0 0
      %476 = vmatpush2.bf16.msra.mxu0 0
      %477 = vmatprep.subr.bf16.mxu0 0
      %478 = vmatpush2.bf16.msra.mxu0 0
      %479 = vmatprep.mubr.bf16.mxu0 0
      %480 = vmatmul.mubr.bf16.gmra.mxu0 %v436
      %v481 = vpop.f32.mrf.mxu0
      %v482 = vadd.f32 %v412, %v481
      %v483 = vpop.f32.mrf.mxu0
      %v484 = vpop.f32.mrf.mxu0
      %v485 = vadd.f32 %v412, %v484
      %v486 = vpop.f32.mrf.mxu0
      %487 = vmatprep.mubr.bf16.mxu0 0
      %488 = vmatmul.mubr.bf16.gmra.mxu0 %v439
      %v489 = vpop.f32.mrf.mxu0
      %v490 = vadd.f32 %v412, %v489
      %v491 = vpop.f32.mrf.mxu0
      %v492 = vpop.f32.mrf.mxu0
      %v493 = vadd.f32 %v412, %v492
      %v494 = vpop.f32.mrf.mxu0
      %495 = vmatprep.mubr.bf16.mxu0 0
      %496 = vmatmul.mubr.bf16.gmra.mxu0 %v442
      %v497 = vpop.f32.mrf.mxu0
      %v498 = vadd.f32 %v412, %v497
      %v499 = vpop.f32.mrf.mxu0
      %v500 = vpop.f32.mrf.mxu0
      %v501 = vadd.f32 %v412, %v500
      %v502 = vpop.f32.mrf.mxu0
      %503 = vmatprep.mubr.bf16.mxu0 0
      %504 = vmatmul.mubr.bf16.gmra.mxu0 %v445
      %v505 = vpop.f32.mrf.mxu0
      %v506 = vadd.f32 %v412, %v505
      %v507 = vpop.f32.mrf.mxu0
      %v508 = vpop.f32.mrf.mxu0
      %v509 = vadd.f32 %v412, %v508
      %v510 = vpop.f32.mrf.mxu0
      %511 = vdwg.mxu0
      %v512 = vmax.f32 %v482, 0.0
      %v513 = vmax.f32 %v485, 0.0
      %v514 = vmax.f32 %v490, 0.0
      %v515 = vmax.f32 %v493, 0.0
      %v516 = vmax.f32 %v498, 0.0
      %v517 = vmax.f32 %v501, 0.0
      %v518 = vmax.f32 %v506, 0.0
      %v519 = vmax.f32 %v509, 0.0
      %v520 = vpack.c.bf16 %v513, %v512
      %v521 = vpack.c.bf16 %v515, %v514
      %v522 = vpack.c.bf16 %v517, %v516
      %v523 = vpack.c.bf16 %v519, %v518
      %v524 = vld [vmem:[%s4] sm:$0xf]
      %v525 = vld [vmem:[%s4 + $0x4] sm:$0xf]
      %v526 = vld [vmem:[%s4 + $0x8] sm:$0xf]
      %v527 = vld [vmem:[%s4 + $0xc] sm:$0xf]
      %v528 = vld [vmem:[%s4 + $0x10] sm:$0xf]
      %v529 = vld [vmem:[%s4 + $0x14] sm:$0xf]
      %v530 = vld [vmem:[%s4 + $0x18] sm:$0xf]
      %v531 = vld [vmem:[%s4 + $0x1c] sm:$0xf]
      %v532 = vld [vmem:[%s4 + $0x20] sm:$0xf]
      %v533 = vld [vmem:[%s4 + $0x24] sm:$0xf]
      %v534 = vld [vmem:[%s4 + $0x28] sm:$0xf]
      %v535 = vld [vmem:[%s4 + $0x2c] sm:$0xf]
      %v536 = vld [vmem:[%s4 + $0x30] sm:$0xf]
      %v537 = vld [vmem:[%s4 + $0x34] sm:$0xf]
      %v538 = vld [vmem:[%s4 + $0x38] sm:$0xf]
      %v539 = vld [vmem:[%s4 + $0x3c] sm:$0xf]
      %v556 = vunpack.c.l.b16 %v524
      %v557 = vunpack.c.l.b16 %v525
      %v558 = vunpack.c.l.b16 %v526
      %v559 = vunpack.c.l.b16 %v527
      %v560 = vunpack.c.l.b16 %v528
      %v561 = vunpack.c.l.b16 %v529
      %v562 = vunpack.c.l.b16 %v530
      %v563 = vunpack.c.l.b16 %v531
      %v564 = vunpack.c.l.b16 %v532
      %v565 = vunpack.c.l.b16 %v533
      %v566 = vunpack.c.l.b16 %v534
      %v567 = vunpack.c.l.b16 %v535
      %v568 = vunpack.c.l.b16 %v536
      %v569 = vunpack.c.l.b16 %v537
      %v570 = vunpack.c.l.b16 %v538
      %v571 = vunpack.c.l.b16 %v539
      %v572 = vpack.c.b16 %v557, %v556
      %v573 = vpack.c.b16 %v559, %v558
      %v574 = vpack.c.b16 %v561, %v560
      %v575 = vpack.c.b16 %v563, %v562
      %v576 = vpack.c.b16 %v565, %v564
      %v577 = vpack.c.b16 %v567, %v566
      %v578 = vpack.c.b16 %v569, %v568
      %v579 = vpack.c.b16 %v571, %v570
      %588 = vmatprep.subr.bf16.mxu0 0
      %589 = vmatpush1.bf16.msra.mxu0 %v579
      %590 = vmatprep.subr.bf16.mxu0 0
      %591 = vmatpush1.bf16.msra.mxu0 %v578
      %592 = vmatprep.subr.bf16.mxu0 0
      %593 = vmatpush1.bf16.msra.mxu0 %v577
      %594 = vmatprep.subr.bf16.mxu0 0
      %595 = vmatpush1.bf16.msra.mxu0 %v576
      %596 = vmatprep.subr.bf16.mxu0 0
      %597 = vmatpush1.bf16.msra.mxu0 %v575
      %598 = vmatprep.subr.bf16.mxu0 0
      %599 = vmatpush1.bf16.msra.mxu0 %v574
      %600 = vmatprep.subr.bf16.mxu0 0
      %601 = vmatpush1.bf16.msra.mxu0 %v573
      %602 = vmatprep.subr.bf16.mxu0 0
      %603 = vmatpush1.bf16.msra.mxu0 %v572
      %604 = vmatprep.subr.bf16.mxu0 0
      %605 = vmatpush2.bf16.msra.mxu0 0
      %606 = vmatprep.subr.bf16.mxu0 0
      %607 = vmatpush2.bf16.msra.mxu0 0
      %608 = vmatprep.subr.bf16.mxu0 0
      %609 = vmatpush2.bf16.msra.mxu0 0
      %610 = vmatprep.subr.bf16.mxu0 0
      %611 = vmatpush2.bf16.msra.mxu0 0
      %612 = vmatprep.subr.bf16.mxu0 0
      %613 = vmatpush2.bf16.msra.mxu0 0
      %614 = vmatprep.subr.bf16.mxu0 0
      %615 = vmatpush2.bf16.msra.mxu0 0
      %616 = vmatprep.subr.bf16.mxu0 0
      %617 = vmatpush2.bf16.msra.mxu0 0
      %618 = vmatprep.subr.bf16.mxu0 0
      %619 = vmatpush2.bf16.msra.mxu0 0
      %620 = vmatprep.mubr.bf16.mxu0 0
      %621 = vmatmul.mubr.bf16.gmra.mxu0 %v520
      %v622 = vpop.f32.mrf.mxu0
      %v623 = vadd.f32 0.0, %v622
      %v624 = vpop.f32.mrf.mxu0
      %v625 = vpop.f32.mrf.mxu0
      %v626 = vadd.f32 0.0, %v625
      %v627 = vpop.f32.mrf.mxu0
      %628 = vmatprep.mubr.bf16.mxu0 0
      %629 = vmatmul.mubr.bf16.gmra.mxu0 %v521
      %v630 = vpop.f32.mrf.mxu0
      %v631 = vadd.f32 0.0, %v630
      %v632 = vpop.f32.mrf.mxu0
      %v633 = vpop.f32.mrf.mxu0
      %v634 = vadd.f32 0.0, %v633
      %v635 = vpop.f32.mrf.mxu0
      %636 = vmatprep.mubr.bf16.mxu0 0
      %637 = vmatmul.mubr.bf16.gmra.mxu0 %v522
      %v638 = vpop.f32.mrf.mxu0
      %v639 = vadd.f32 0.0, %v638
      %v640 = vpop.f32.mrf.mxu0
      %v641 = vpop.f32.mrf.mxu0
      %v642 = vadd.f32 0.0, %v641
      %v643 = vpop.f32.mrf.mxu0
      %644 = vmatprep.mubr.bf16.mxu0 0
      %645 = vmatmul.mubr.bf16.gmra.mxu0 %v523
      %v646 = vpop.f32.mrf.mxu0
      %v647 = vadd.f32 0.0, %v646
      %v648 = vpop.f32.mrf.mxu0
      %v649 = vpop.f32.mrf.mxu0
      %v650 = vadd.f32 0.0, %v649
      %v651 = vpop.f32.mrf.mxu0
      %652 = vdwg.mxu0
      %v653 = vpack.c.bf16 %v626, %v623
      %v654 = vpack.c.bf16 %v634, %v631
      %v655 = vpack.c.bf16 %v642, %v639
      %v656 = vpack.c.bf16 %v650, %v647
      %v657 = vld [vmem:[%s5] sm:$0x1]
      %v659 = vlaneseq
      %v660 = vshrl.u32 %v659, 7
      %v661 = vsub.s32 0, %v660
      %v662 = vrot.slane %v657, %v661
      %664 = vmatprep.subr.bf16.mxu0 0
      %665 = vmatpush1.bf16.msra.mxu0 0
      %666 = vmatprep.subr.bf16.mxu0 0
      %667 = vmatpush1.bf16.msra.mxu0 0
      %668 = vmatprep.subr.bf16.mxu0 0
      %669 = vmatpush1.bf16.msra.mxu0 0
      %670 = vmatprep.subr.bf16.mxu0 0
      %671 = vmatpush1.bf16.msra.mxu0 0
      %672 = vmatprep.subr.bf16.mxu0 0
      %673 = vmatpush1.bf16.msra.mxu0 %v656
      %674 = vmatprep.subr.bf16.mxu0 0
      %675 = vmatpush1.bf16.msra.mxu0 %v655
      %676 = vmatprep.subr.bf16.mxu0 0
      %677 = vmatpush1.bf16.msra.mxu0 %v654
      %678 = vmatprep.subr.bf16.mxu0 0
      %679 = vmatpush1.bf16.msra.mxu0 %v653
      %680 = vmatprep.subr.bf16.mxu0 0
      %681 = vmatpush2.bf16.msra.mxu0 0
      %682 = vmatprep.subr.bf16.mxu0 0
      %683 = vmatpush2.bf16.msra.mxu0 0
      %684 = vmatprep.subr.bf16.mxu0 0
      %685 = vmatpush2.bf16.msra.mxu0 0
      %686 = vmatprep.subr.bf16.mxu0 0
      %687 = vmatpush2.bf16.msra.mxu0 0
      %688 = vmatprep.subr.bf16.mxu0 0
      %689 = vmatpush2.bf16.msra.mxu0 0
      %690 = vmatprep.subr.bf16.mxu0 0
      %691 = vmatpush2.bf16.msra.mxu0 0
      %692 = vmatprep.subr.bf16.mxu0 0
      %693 = vmatpush2.bf16.msra.mxu0 0
      %694 = vmatprep.subr.bf16.mxu0 0
      %695 = vmatpush2.bf16.msra.mxu0 0
      %696 = vmatprep.mubr.bf16.mxu0 0
      %697 = vmatmul.mubr.bf16.gmra.mxu0 %v436
      %v698 = vpop.f32.mrf.mxu0
      %v699 = vadd.f32 %v662, %v698
      %v700 = vpop.f32.mrf.mxu0
      %v701 = vpop.f32.mrf.mxu0
      %v702 = vadd.f32 %v662, %v701
      %v703 = vpop.f32.mrf.mxu0
      %704 = vmatprep.mubr.bf16.mxu0 0
      %705 = vmatmul.mubr.bf16.gmra.mxu0 %v439
      %v706 = vpop.f32.mrf.mxu0
      %v707 = vadd.f32 %v662, %v706
      %v708 = vpop.f32.mrf.mxu0
      %v709 = vpop.f32.mrf.mxu0
      %v710 = vadd.f32 %v662, %v709
      %v711 = vpop.f32.mrf.mxu0
      %712 = vmatprep.mubr.bf16.mxu0 0
      %713 = vmatmul.mubr.bf16.gmra.mxu0 %v442
      %v714 = vpop.f32.mrf.mxu0
      %v715 = vadd.f32 %v662, %v714
      %v716 = vpop.f32.mrf.mxu0
      %v717 = vpop.f32.mrf.mxu0
      %v718 = vadd.f32 %v662, %v717
      %v719 = vpop.f32.mrf.mxu0
      %720 = vmatprep.mubr.bf16.mxu0 0
      %721 = vmatmul.mubr.bf16.gmra.mxu0 %v445
      %v722 = vpop.f32.mrf.mxu0
      %v723 = vadd.f32 %v662, %v722
      %v724 = vpop.f32.mrf.mxu0
      %v725 = vpop.f32.mrf.mxu0
      %v726 = vadd.f32 %v662, %v725
      %v727 = vpop.f32.mrf.mxu0
      %728 = vdwg.mxu0
      %v729 = vlaneseq
      %v730 = vand.u32 %v729, 127
      %vm731 = vcmp.lt.s32.totalorder %v730, 8
      %v732 = vsel %vm731, %v699, -1e+30
      %v733 = vsel %vm731, %v702, -1e+30
      %v734 = vsel %vm731, %v707, -1e+30
      %v735 = vsel %vm731, %v710, -1e+30
      %v736 = vsel %vm731, %v715, -1e+30
      %v737 = vsel %vm731, %v718, -1e+30
      %v738 = vsel %vm731, %v723, -1e+30
      %v739 = vsel %vm731, %v726, -1e+30
      %740 = vmax.xlane.f32.xlu0 %v732
      %v741 = vpop.xlane.xlu0 %740
      %742 = vmax.xlane.f32.xlu0 %v733
      %v743 = vpop.xlane.xlu0 %742
      %744 = vmax.xlane.f32.xlu0 %v734
      %v745 = vpop.xlane.xlu0 %744
      %746 = vmax.xlane.f32.xlu0 %v735
      %v747 = vpop.xlane.xlu0 %746
      %748 = vmax.xlane.f32.xlu0 %v736
      %v749 = vpop.xlane.xlu0 %748
      %750 = vmax.xlane.f32.xlu0 %v737
      %v751 = vpop.xlane.xlu0 %750
      %752 = vmax.xlane.f32.xlu0 %v738
      %v753 = vpop.xlane.xlu0 %752
      %754 = vmax.xlane.f32.xlu0 %v739
      %v755 = vpop.xlane.xlu0 %754
      %v756 = vsub.f32 %v732, %v741
      %v757 = vsub.f32 %v733, %v743
      %v758 = vsub.f32 %v734, %v745
      %v759 = vsub.f32 %v735, %v747
      %v760 = vsub.f32 %v736, %v749
      %v761 = vsub.f32 %v737, %v751
      %v762 = vsub.f32 %v738, %v753
      %v763 = vsub.f32 %v739, %v755
      %v764 = vmul.f32 %v756, 1.442695
      %v765 = vpow.pop %v764
      %v766 = vmul.f32 %v757, 1.442695
      %v767 = vpow.pop %v766
      %v768 = vmul.f32 %v758, 1.442695
      %v769 = vpow.pop %v768
      %v770 = vmul.f32 %v759, 1.442695
      %v771 = vpow.pop %v770
      %v772 = vmul.f32 %v760, 1.442695
      %v773 = vpow.pop %v772
      %v774 = vmul.f32 %v761, 1.442695
      %v775 = vpow.pop %v774
      %v776 = vmul.f32 %v762, 1.442695
      %v777 = vpow.pop %v776
      %v778 = vmul.f32 %v763, 1.442695
      %v779 = vpow.pop %v778
      %780 = vadd.xlane.f32.xlu0 %v765
      %v781 = vpop.xlane.xlu0 %780
      %782 = vadd.xlane.f32.xlu0 %v767
      %v783 = vpop.xlane.xlu0 %782
      %784 = vadd.xlane.f32.xlu0 %v769
      %v785 = vpop.xlane.xlu0 %784
      %786 = vadd.xlane.f32.xlu0 %v771
      %v787 = vpop.xlane.xlu0 %786
      %788 = vadd.xlane.f32.xlu0 %v773
      %v789 = vpop.xlane.xlu0 %788
      %790 = vadd.xlane.f32.xlu0 %v775
      %v791 = vpop.xlane.xlu0 %790
      %792 = vadd.xlane.f32.xlu0 %v777
      %v793 = vpop.xlane.xlu0 %792
      %794 = vadd.xlane.f32.xlu0 %v779
      %v795 = vpop.xlane.xlu0 %794
      %v796 = vlog2.pop %v781
      %v797 = vmul.f32 %v796, 0.6931472
      %v798 = vlog2.pop %v783
      %v799 = vmul.f32 %v798, 0.6931472
      %v800 = vlog2.pop %v785
      %v801 = vmul.f32 %v800, 0.6931472
      %v802 = vlog2.pop %v787
      %v803 = vmul.f32 %v802, 0.6931472
      %v804 = vlog2.pop %v789
      %v805 = vmul.f32 %v804, 0.6931472
      %v806 = vlog2.pop %v791
      %v807 = vmul.f32 %v806, 0.6931472
      %v808 = vlog2.pop %v793
      %v809 = vmul.f32 %v808, 0.6931472
      %v810 = vlog2.pop %v795
      %v811 = vmul.f32 %v810, 0.6931472
      %v812 = vsub.f32 %v756, %v797
      %v813 = vsub.f32 %v757, %v799
      %v814 = vsub.f32 %v758, %v801
      %v815 = vsub.f32 %v759, %v803
      %v816 = vsub.f32 %v760, %v805
      %v817 = vsub.f32 %v761, %v807
      %v818 = vsub.f32 %v762, %v809
      %v819 = vsub.f32 %v763, %v811
      %820 = vst [vmem:[%s271] sm:$0xff] %v812
      %821 = vst [vmem:[%s271 + $0x8] sm:$0xff] %v813
      %822 = vst [vmem:[%s271 + $0x10] sm:$0xff] %v814
      %823 = vst [vmem:[%s271 + $0x18] sm:$0xff] %v815
      %824 = vst [vmem:[%s271 + $0x20] sm:$0xff] %v816
      %825 = vst [vmem:[%s271 + $0x28] sm:$0xff] %v817
      %826 = vst [vmem:[%s271 + $0x30] sm:$0xff] %v818
      %827 = vst [vmem:[%s271 + $0x38] sm:$0xff] %v819
      %p828 = scmp.lt.s32.totalorder %s17, 3
      %s829 = scalar_select %p828, %s17, 3
      %s830 = smul.addr %s829, 8
      %s831 = smul.addr %s830, 8
      %s832 = scalar_lea.vmem %s6, %s831
      // Predicated region
      $region45: #{gcn_forward.1} parent=43 // pred_check
        %p833 = pneg %p171
      $region46: #{gcn_forward.1} parent=43 // pred_check_branch
        %835 = sbr.rel (%p833) target = $region48
      $region47: #{gcn_forward.1} parent=43 // pred_region
        _
      $region48: #{gcn_forward.1} parent=43 // pred_fallthru
        _
    $region44: #{gcn_forward.1} parent=5 // pred_fallthru
      _
    %p836 = scmp.le.s32.totalorder 2, %s12
    // Predicated region
    $region49: #{gcn_forward.1} parent=5 // pred_check
      %p837 = pneg %p836
    $region50: #{gcn_forward.1} parent=5 // pred_check_branch
      %839 = sbr.rel (%p837) target = $region52
    $region51: #{gcn_forward.1} parent=5 // pred_region
      %s840 = ssub.s32 %s12, 2
      // Predicated region
      $region53: #{gcn_forward.1} parent=51 // pred_check
        %p841 = pneg %p177
      $region54: #{gcn_forward.1} parent=51 // pred_check_branch
        %843 = sbr.rel (%p841) target = $region56
      $region55: #{gcn_forward.1} parent=51 // pred_region
        %p844 = scmp.lt.s32.totalorder %s18, 3
        %s845 = scalar_select %p844, %s18, 3
        %s846 = smul.addr %s845, 8
        %s847 = smul.addr %s846, 8
        %s848 = scalar_lea.vmem %s6, %s847
      $region56: #{gcn_forward.1} parent=51 // pred_fallthru
        _
    $region52: #{gcn_forward.1} parent=5 // pred_fallthru
      _
  $region6: #{gcn_forward.1} parent=0 // loop_footer
    %s16 = sadd.s32 1, %s12
  $region7: #{gcn_forward.1} parent=0 // loop_footer_branch
    %11 = sbr.rel target = $region3
  $region8: #{gcn_forward.1} parent=0 // loop_exit
    _

</llo_original>
